<compile_context>
chip_gen: v7x
topology: tpu7x:2x2x1
jax: 0.10.0
libtpu: 0.0.40
codegen_flags: <defaults>
</compile_context>

<pallas_src>
import jax
import jax.numpy as jnp
from jax.experimental import pallas as pl
from jax.experimental.pallas import tpu as pltpu

N_CHANNELS = 7
DROPOUT_P = 0.2


def _decoder_kernel(x_ref, scale_ref, w_ref, b_ref, o_ref):
    # x_ref     : (B, H)     encoded input
    # scale_ref : (B, H)     dropout keep/scale mask (0 or 1/(1-p))
    # w_ref     : (H, C*F)   fused per-channel weights (W[c, h, f] -> w[h, c*F+f])
    # b_ref     : (1, C*F)   fused per-channel bias
    # o_ref     : (B, C*F)   fused output (last dim = 7*128 = 896, lane-dense)
    x = x_ref[...] * scale_ref[...]
    o_ref[...] = (
        jnp.dot(x, w_ref[...], preferred_element_type=jnp.float32) + b_ref[...]
    )


def make_dropout_scale(key, shape, p=DROPOUT_P):
    """Training-mode dropout scale: 0 with prob p, else 1/(1-p)."""
    # TODO(synk): dropout mask is generated with jax.random in the wrapper
    # (pltpu.prng_* does not lower under interpret mode); the mask multiply
    # itself still runs fused inside the Pallas kernel.
    keep = jax.random.bernoulli(key, 1.0 - p, shape)
    return jnp.where(keep, 1.0 / (1.0 - p), 0.0).astype(jnp.float32)


def decoder_forward(encoded, weight, bias, dropout_key=None, *,
                    p=DROPOUT_P, training=True):
    """encoded: (B, H) f32; weight: (C, H, F) f32; bias: (C, F) f32.

    Returns (B, C, F) f32, matching the PyTorch module's output layout.
    """
    B, H = encoded.shape
    C, H2, F = weight.shape
    assert H == H2 and bias.shape == (C, F)

    # Fuse the C per-channel (H, F) linear maps into one (H, C*F) matmul.
    # out[b, c, f] = sum_h x[b, h] * W[c, h, f] + bias[c, f]
    #             => x @ W_fused where W_fused[h, c*F + f] = W[c, h, f].
    w_fused = jnp.transpose(weight, (1, 0, 2)).reshape(H, C * F)
    b_fused = bias.reshape(1, C * F)

    if training and p > 0.0:
        assert dropout_key is not None
        scale = make_dropout_scale(dropout_key, (B, H), p)
    else:
        scale = jnp.ones((B, H), dtype=jnp.float32)

    out_fused = pl.pallas_call(
        _decoder_kernel,
        out_shape=jax.ShapeDtypeStruct((B, C * F), jnp.float32),
        grid=(1,),  # entire problem fits VMEM: single step, no pipelining overhead
        in_specs=[
            pl.BlockSpec((B, H), lambda i: (0, 0)),        # encoded
            pl.BlockSpec((B, H), lambda i: (0, 0)),        # dropout scale mask
            pl.BlockSpec((H, C * F), lambda i: (0, 0)),    # fused weights
            pl.BlockSpec((1, C * F), lambda i: (0, 0)),    # fused bias
        ],
        out_specs=pl.BlockSpec((B, C * F), lambda i: (0, 0)),
        compiler_params=pltpu.CompilerParams(
            dimension_semantics=("arbitrary",),
        ),
    )(encoded, scale, w_fused, b_fused)

    # (B, C*F) -> (B, C, F): free reshape (no transpose, no extra HBM pass).
    return out_fused.reshape(B, C, F)


if __name__ == "__main__":
    # Small shapes consistent with the module: n_hidden=32, n_features=128,
    # batch=8, n_channels=7 (fixed by Decoder.__init__).
    B, H, F, C = 8, 32, 128, N_CHANNELS

    key = jax.random.PRNGKey(0)
    k_x, k_w, k_b, k_drop = jax.random.split(key, 4)

    encoded = jax.random.normal(k_x, (B, H), dtype=jnp.float32)
    # Deterministic synthetic parameters (CustomLayer weights/biases).
    weight = jax.random.normal(k_w, (C, H, F), dtype=jnp.float32) * (1.0 / jnp.sqrt(H))
    bias = jax.random.normal(k_b, (C, F), dtype=jnp.float32) * 0.01

    # Deterministic parity check of the fused matmul + bias path (dropout off).
    out_eval = decoder_forward(encoded, weight, bias, training=False)
    ref = jnp.einsum("bh,chf->bcf", encoded, weight) + bias[None, :, :]
    assert out_eval.shape == (B, C, F)
    assert bool(jnp.allclose(out_eval, ref, atol=1e-4, rtol=1e-4))

    # Training-mode run (dropout mask applied inside the kernel).
    out = decoder_forward(encoded, weight, bias, dropout_key=k_drop, training=True)
    out = jax.block_until_ready(out)

    assert out.shape == (B, C, F)
    assert out.dtype == jnp.float32
    assert bool(jnp.all(jnp.isfinite(out)))
    print("KERNEL_OK")
</pallas_src>

<mosaic_0001>
module attributes {stable_mosaic.version = 11 : i64} {
  func.func @_decoder_kernel(%arg0: i32, %arg1: memref<8x32xf32, #tpu.memory_space<vmem>>, %arg2: memref<8x32xf32, #tpu.memory_space<vmem>>, %arg3: memref<32x896xf32, #tpu.memory_space<vmem>>, %arg4: memref<1x896xf32, #tpu.memory_space<vmem>>, %arg5: memref<8x896xf32, #tpu.memory_space<vmem>>) attributes {dimension_semantics = [#tpu.dimension_semantics<arbitrary>], iteration_bounds = array<i64: 1>, scalar_prefetch = 0 : i64, scratch_operands = 0 : i64, tpu.core_type = #tpu.core_type<tc>, window_params = [{pipeline_mode = #tpu.pipeline_mode<synchronous>, transform_indices = @transform_0, window_bounds = array<i64: 8, 32>}, {pipeline_mode = #tpu.pipeline_mode<synchronous>, transform_indices = @transform_1, window_bounds = array<i64: 8, 32>}, {pipeline_mode = #tpu.pipeline_mode<synchronous>, transform_indices = @transform_2, window_bounds = array<i64: 32, 896>}, {pipeline_mode = #tpu.pipeline_mode<synchronous>, transform_indices = @transform_3, window_bounds = array<i64: 1, 896>}, {pipeline_mode = #tpu.pipeline_mode<synchronous>, transform_indices = @transform_4, window_bounds = array<i64: 8, 896>}]} {
    %c0 = arith.constant 0 : index
    %c0_0 = arith.constant 0 : index
    %0 = vector.load %arg1[%c0, %c0_0] : memref<8x32xf32, #tpu.memory_space<vmem>>, vector<8x32xf32>
    %c0_1 = arith.constant 0 : index
    %c0_2 = arith.constant 0 : index
    %1 = vector.load %arg2[%c0_1, %c0_2] : memref<8x32xf32, #tpu.memory_space<vmem>>, vector<8x32xf32>
    %2 = arith.mulf %0, %1 : vector<8x32xf32>
    %c0_3 = arith.constant 0 : index
    %c0_4 = arith.constant 0 : index
    %3 = vector.load %arg3[%c0_3, %c0_4] : memref<32x896xf32, #tpu.memory_space<vmem>>, vector<32x896xf32>
    %cst = arith.constant dense<0.000000e+00> : vector<8x896xf32>
    %4 = tpu.matmul %2, %3, %cst {dimension_numbers = #tpu.dot_dimension_numbers<[1], [0], [0], [1], [0, 0, 1, 1], [], []>} : vector<8x32xf32>, vector<32x896xf32>, vector<8x896xf32> -> vector<8x896xf32>
    %c0_5 = arith.constant 0 : index
    %c0_6 = arith.constant 0 : index
    %5 = vector.load %arg4[%c0_5, %c0_6] : memref<1x896xf32, #tpu.memory_space<vmem>>, vector<1x896xf32>
    %6 = vector.broadcast %5 : vector<1x896xf32> to vector<8x896xf32>
    %7 = arith.addf %4, %6 : vector<8x896xf32>
    %c0_7 = arith.constant 0 : index
    %c0_8 = arith.constant 0 : index
    %8 = vector.load %arg5[%c0_7, %c0_8] : memref<8x896xf32, #tpu.memory_space<vmem>>, vector<8x896xf32>
    tpu.vector_store %arg5[%c0_7, %c0_8], %7 {strides = array<i32>} : memref<8x896xf32, #tpu.memory_space<vmem>>, vector<8x896xf32>,
    return
  }
  func.func @transform_0(%arg0: i32) -> (i32, i32) {
    %c0_i32 = arith.constant 0 : i32
    %c0_i32_0 = arith.constant 0 : i32
    %c0_i32_1 = arith.constant 0 : i32
    return %c0_i32, %c0_i32_0 : i32, i32
  }
  func.func @transform_1(%arg0: i32) -> (i32, i32) {
    %c0_i32 = arith.constant 0 : i32
    %c0_i32_0 = arith.constant 0 : i32
    %c0_i32_1 = arith.constant 0 : i32
    return %c0_i32, %c0_i32_0 : i32, i32
  }
  func.func @transform_2(%arg0: i32) -> (i32, i32) {
    %c0_i32 = arith.constant 0 : i32
    %c0_i32_0 = arith.constant 0 : i32
    %c0_i32_1 = arith.constant 0 : i32
    return %c0_i32, %c0_i32_0 : i32, i32
  }
  func.func @transform_3(%arg0: i32) -> (i32, i32) {
    %c0_i32 = arith.constant 0 : i32
    %c0_i32_0 = arith.constant 0 : i32
    %c0_i32_1 = arith.constant 0 : i32
    return %c0_i32, %c0_i32_0 : i32, i32
  }
  func.func @transform_4(%arg0: i32) -> (i32, i32) {
    %c0_i32 = arith.constant 0 : i32
    %c0_i32_0 = arith.constant 0 : i32
    %c0_i32_1 = arith.constant 0 : i32
    return %c0_i32, %c0_i32_0 : i32, i32
  }
}

</mosaic_0001>

<llo_original>
// kernel: tpu_custom_call.1
$region0: #{tpu_custom_call.1}
  #allocation0 [shape = 'u32[]', space=smem, size = 0x4, offset = 0x4, fixed_abs, tag = 'smem constant byte address 0x4 - core index']
  #allocation1 [shape = 'u32[144,128]{1,0:T(1,128)}', space=vmem, size = 0x12000, scoped, tag = 'internal scratch']
  %s0 = inlined_call_operand.hbm [shape: f32[8,32], index: 0, kind: input, shape index: {}]
  %s1 = inlined_call_operand.hbm [shape: f32[8,32], index: 1, kind: input, shape index: {}]
  %s2 = inlined_call_operand.hbm [shape: f32[32,896], index: 2, kind: input, shape index: {}]
  %s3 = inlined_call_operand.vmem [shape: f32[1,896], index: 3, kind: input, shape index: {}]
  %s4 = inlined_call_operand.hbm [shape: f32[8,896], index: 4, kind: output, shape index: {}]
  %s5 = sld [smem:[#allocation0]]
  $region38: #{tpu_custom_call.1} parent=0
    _
  %s7 = ssub.s32 1, %s5
  %s8 = scalar_select 0, %s7, %s5
  $region1: #{tpu_custom_call.1} parent=0
    #allocation2 [shape = 'u8[4096]{0}', space=vmem, size = 0x1000, scoped, tag = 'input window, operand 0, single buffered']
    #allocation3 [shape = 's32[1]{0}', space=sflag, size = 0x4, scoped, tag = 'scoped memory for tpu_custom_call.1']
    #allocation4 [shape = 's32[1]{0}', space=sflag, size = 0x4, scoped, tag = 'scoped memory for tpu_custom_call.1']
    #allocation5 [shape = 'u8[4096]{0}', space=vmem, size = 0x1000, scoped, tag = 'input window, operand 1, single buffered']
    #allocation6 [shape = 's32[1]{0}', space=sflag, size = 0x4, scoped, tag = 'scoped memory for tpu_custom_call.1']
    #allocation7 [shape = 'u8[114688]{0}', space=vmem, size = 0x1c000, scoped, tag = 'input window, operand 2, single buffered']
    #allocation8 [shape = 'u8[28672]{0}', space=vmem, size = 0x7000, scoped, tag = 'output window, operand 0, single buffered']
    %9 = vsyncpa [#allocation3], 0
    %10 = vsyncpa [#allocation6], 0
    %11 = vsyncpa [#allocation4], 0
    // Predicated region
    $region2: #{tpu_custom_call.1} parent=1 // pred_check
      _
    $region3: #{tpu_custom_call.1} parent=1 // pred_check_branch
      %13 = sbr.rel (0) target = $region5
    $region4: #{tpu_custom_call.1} parent=1 // pred_region
      %s15 = ssub.s32 128, 128
      %16 = vsyncadd [#allocation3], %s15
      %s18 = sshll.u32 [#allocation2], 4
      %s19 = int_to_ptr.vmem [resolvable:$true] %s18
      %21 = dma.hbm_to_vmem [thread:$0]  %s0, 128, %s19, [#allocation3]
    $region5: #{tpu_custom_call.1} parent=1 // pred_fallthru
      _
    // Predicated region
    $region6: #{tpu_custom_call.1} parent=1 // pred_check
      _
    $region7: #{tpu_custom_call.1} parent=1 // pred_check_branch
      %23 = sbr.rel (0) target = $region9
    $region8: #{tpu_custom_call.1} parent=1 // pred_region
      %s25 = ssub.s32 128, 128
      %26 = vsyncadd [#allocation6], %s25
      %s28 = sshll.u32 [#allocation5], 4
      %s29 = int_to_ptr.vmem [resolvable:$true] %s28
      %31 = dma.hbm_to_vmem [thread:$0]  %s1, 128, %s29, [#allocation6]
    $region9: #{tpu_custom_call.1} parent=1 // pred_fallthru
      _
    // Predicated region
    $region10: #{tpu_custom_call.1} parent=1 // pred_check
      _
    $region11: #{tpu_custom_call.1} parent=1 // pred_check_branch
      %33 = sbr.rel (0) target = $region13
    $region12: #{tpu_custom_call.1} parent=1 // pred_region
      %s35 = ssub.s32 3584, 3584
      %36 = vsyncadd [#allocation6], %s35
      %s37 = sshll.u32 [#allocation7], 4
      %s38 = int_to_ptr.vmem [resolvable:$true] %s37
      %43 = dma.hbm_to_vmem [thread:$0]  %s2, 3584, %s38, [#allocation6], 896, 896, 56
    $region13: #{tpu_custom_call.1} parent=1 // pred_fallthru
      _
    // Predicated region
    $region14: #{tpu_custom_call.1} parent=1 // pred_check
      _
    $region15: #{tpu_custom_call.1} parent=1 // pred_check_branch
      %45 = sbr.rel (0) target = $region17
    $region16: #{tpu_custom_call.1} parent=1 // pred_region
      _
    $region17: #{tpu_custom_call.1} parent=1 // pred_fallthru
      _
    // Predicated region
    $region18: #{tpu_custom_call.1} parent=1 // pred_check
      _
    $region19: #{tpu_custom_call.1} parent=1 // pred_check_branch
      %47 = sbr.rel (0) target = $region21
    $region20: #{tpu_custom_call.1} parent=1 // pred_region
      %48 = dma.done [#allocation3], 128
    $region21: #{tpu_custom_call.1} parent=1 // pred_fallthru
      _
    // Predicated region
    $region22: #{tpu_custom_call.1} parent=1 // pred_check
      _
    $region23: #{tpu_custom_call.1} parent=1 // pred_check_branch
      %50 = sbr.rel (0) target = $region25
    $region24: #{tpu_custom_call.1} parent=1 // pred_region
      %51 = dma.done [#allocation6], 128
    $region25: #{tpu_custom_call.1} parent=1 // pred_fallthru
      _
    // Predicated region
    $region26: #{tpu_custom_call.1} parent=1 // pred_check
      _
    $region27: #{tpu_custom_call.1} parent=1 // pred_check_branch
      %53 = sbr.rel (0) target = $region29
    $region28: #{tpu_custom_call.1} parent=1 // pred_region
      %54 = dma.done [#allocation6], 3584
    $region29: #{tpu_custom_call.1} parent=1 // pred_fallthru
      _
    %v55 = vld [vmem:[#allocation2] sm:$0xff]
    %v56 = vld [vmem:[#allocation5] sm:$0xff]
    %v57 = vmul.f32 %v55, %v56
    %v58 = vld [vmem:[#allocation7] sm:$0xff]
    %v59 = vld [vmem:[#allocation7 + $0x8] sm:$0xff]
    %v60 = vld [vmem:[#allocation7 + $0x10] sm:$0xff]
    %v61 = vld [vmem:[#allocation7 + $0x18] sm:$0xff]
    %v62 = vld [vmem:[#allocation7 + $0x20] sm:$0xff]
    %v63 = vld [vmem:[#allocation7 + $0x28] sm:$0xff]
    %v64 = vld [vmem:[#allocation7 + $0x30] sm:$0xff]
    %v65 = vld [vmem:[#allocation7 + $0x38] sm:$0xff]
    %v66 = vld [vmem:[#allocation7 + $0x40] sm:$0xff]
    %v67 = vld [vmem:[#allocation7 + $0x48] sm:$0xff]
    %v68 = vld [vmem:[#allocation7 + $0x50] sm:$0xff]
    %v69 = vld [vmem:[#allocation7 + $0x58] sm:$0xff]
    %v70 = vld [vmem:[#allocation7 + $0x60] sm:$0xff]
    %v71 = vld [vmem:[#allocation7 + $0x68] sm:$0xff]
    %v72 = vld [vmem:[#allocation7 + $0x70] sm:$0xff]
    %v73 = vld [vmem:[#allocation7 + $0x78] sm:$0xff]
    %v74 = vld [vmem:[#allocation7 + $0x80] sm:$0xff]
    %v75 = vld [vmem:[#allocation7 + $0x88] sm:$0xff]
    %v76 = vld [vmem:[#allocation7 + $0x90] sm:$0xff]
    %v77 = vld [vmem:[#allocation7 + $0x98] sm:$0xff]
    %v78 = vld [vmem:[#allocation7 + $0xa0] sm:$0xff]
    %v79 = vld [vmem:[#allocation7 + $0xa8] sm:$0xff]
    %v80 = vld [vmem:[#allocation7 + $0xb0] sm:$0xff]
    %v81 = vld [vmem:[#allocation7 + $0xb8] sm:$0xff]
    %v82 = vld [vmem:[#allocation7 + $0xc0] sm:$0xff]
    %v83 = vld [vmem:[#allocation7 + $0xc8] sm:$0xff]
    %v84 = vld [vmem:[#allocation7 + $0xd0] sm:$0xff]
    %v85 = vld [vmem:[#allocation7 + $0xd8] sm:$0xff]
    %v86 = vld [vmem:[%s3] sm:$0xff]
    %v88 = vlaneseq
    %v89 = vshrl.u32 %v88, 7
    %v90 = vsub.s32 0, %v89
    %v91 = vrot.slane %v86, %v90
    %v92 = vlaneseq
    %v93 = vshrl.u32 %v92, 7
    %v94 = vsub.s32 1, %v93
    %v95 = vrot.slane %v86, %v94
    %v96 = vlaneseq
    %v97 = vshrl.u32 %v96, 7
    %v98 = vsub.s32 2, %v97
    %v99 = vrot.slane %v86, %v98
    %v100 = vlaneseq
    %v101 = vshrl.u32 %v100, 7
    %v102 = vsub.s32 3, %v101
    %v103 = vrot.slane %v86, %v102
    %v104 = vlaneseq
    %v105 = vshrl.u32 %v104, 7
    %v106 = vsub.s32 4, %v105
    %v107 = vrot.slane %v86, %v106
    %v108 = vlaneseq
    %v109 = vshrl.u32 %v108, 7
    %v110 = vsub.s32 5, %v109
    %v111 = vrot.slane %v86, %v110
    %v112 = vlaneseq
    %v113 = vshrl.u32 %v112, 7
    %v114 = vsub.s32 6, %v113
    %v115 = vrot.slane %v86, %v114
    %vm123 = vcmask 261120
    %v125 = vsel %vm123, %v57, 0
    %127 = vmatprep.subr.mxu0 %v59
    %128 = vmatpush1.msra.mxu0 %v58
    %129 = vmatprep.subr.mxu0 %v66
    %130 = vmatpush1.msra.mxu0 %v65
    %131 = vmatprep.subr.mxu0 %v73
    %132 = vmatpush1.msra.mxu0 %v72
    %133 = vmatprep.subr.mxu0 %v80
    %134 = vmatpush1.msra.mxu0 %v79
    %135 = vmatprep.subr.mxu0 0.0
    %136 = vmatpush1.msra.mxu0 0.0
    %137 = vmatprep.subr.mxu0 0.0
    %138 = vmatpush1.msra.mxu0 0.0
    %139 = vmatprep.subr.mxu0 0.0
    %140 = vmatpush1.msra.mxu0 0.0
    %141 = vmatprep.subr.mxu0 0.0
    %142 = vmatpush1.msra.mxu0 0.0
    %143 = vmatprep.subr.mxu0 0.0
    %144 = vmatpush1.msra.mxu0 0.0
    %145 = vmatprep.subr.mxu0 0.0
    %146 = vmatpush1.msra.mxu0 0.0
    %147 = vmatprep.subr.mxu0 0.0
    %148 = vmatpush1.msra.mxu0 0.0
    %149 = vmatprep.subr.mxu0 0.0
    %150 = vmatpush1.msra.mxu0 0.0
    %151 = vmatprep.subr.mxu0 0.0
    %152 = vmatpush1.msra.mxu0 0.0
    %153 = vmatprep.subr.mxu0 0.0
    %154 = vmatpush1.msra.mxu0 0.0
    %155 = vmatprep.subr.mxu0 0.0
    %156 = vmatpush1.msra.mxu0 0.0
    %157 = vmatprep.subr.mxu0 0.0
    %158 = vmatpush1.msra.mxu0 0.0
    %159 = vmatprep.subr.mxu0 0.0
    %160 = vmatpush1.msra.mxu0 0.0
    %161 = vmatprep.subr.mxu0 0.0
    %162 = vmatpush1.msra.mxu0 0.0
    %163 = vmatprep.subr.mxu0 0.0
    %164 = vmatpush1.msra.mxu0 0.0
    %165 = vmatprep.subr.mxu0 0.0
    %166 = vmatpush1.msra.mxu0 0.0
    %167 = vmatprep.subr.mxu0 0.0
    %168 = vmatpush1.msra.mxu0 0.0
    %169 = vmatprep.subr.mxu0 0.0
    %170 = vmatpush1.msra.mxu0 0.0
    %171 = vmatprep.subr.mxu0 0.0
    %172 = vmatpush1.msra.mxu0 0.0
    %173 = vmatprep.subr.mxu0 0.0
    %174 = vmatpush1.msra.mxu0 0.0
    %175 = vmatprep.subr.mxu0 0.0
    %176 = vmatpush1.msra.mxu0 0.0
    %177 = vmatprep.subr.mxu0 0.0
    %178 = vmatpush1.msra.mxu0 0.0
    %179 = vmatprep.subr.mxu0 0.0
    %180 = vmatpush1.msra.mxu0 0.0
    %181 = vmatprep.subr.mxu0 0.0
    %182 = vmatpush1.msra.mxu0 0.0
    %183 = vmatprep.subr.mxu0 0.0
    %184 = vmatpush1.msra.mxu0 0.0
    %185 = vmatprep.subr.mxu0 0.0
    %186 = vmatpush1.msra.mxu0 0.0
    %187 = vmatprep.subr.mxu0 0.0
    %188 = vmatpush1.msra.mxu0 0.0
    %189 = vmatprep.subr.mxu0 0.0
    %190 = vmatpush1.msra.mxu0 0.0
    %191 = vmatprep.mubr.f32.mxu0 0.0
    %192 = vmatmul.mubr.f32.gmra.mrb[0].mxu0 %v125
    %v193 = vpop.f32.mrb[0].mxu0
    %v194 = vadd.f32 %v91, %v193
    %v195 = vpop.f32.mrb[0].mxu0
    %v196 = vadd.f32 %v95, %v195
    %197 = vdwg.mxu0
    %198 = vmatprep.subr.mxu0 %v61
    %199 = vmatpush1.msra.mxu0 %v60
    %200 = vmatprep.subr.mxu0 %v68
    %201 = vmatpush1.msra.mxu0 %v67
    %202 = vmatprep.subr.mxu0 %v75
    %203 = vmatpush1.msra.mxu0 %v74
    %204 = vmatprep.subr.mxu0 %v82
    %205 = vmatpush1.msra.mxu0 %v81
    %206 = vmatprep.subr.mxu0 0.0
    %207 = vmatpush1.msra.mxu0 0.0
    %208 = vmatprep.subr.mxu0 0.0
    %209 = vmatpush1.msra.mxu0 0.0
    %210 = vmatprep.subr.mxu0 0.0
    %211 = vmatpush1.msra.mxu0 0.0
    %212 = vmatprep.subr.mxu0 0.0
    %213 = vmatpush1.msra.mxu0 0.0
    %214 = vmatprep.subr.mxu0 0.0
    %215 = vmatpush1.msra.mxu0 0.0
    %216 = vmatprep.subr.mxu0 0.0
    %217 = vmatpush1.msra.mxu0 0.0
    %218 = vmatprep.subr.mxu0 0.0
    %219 = vmatpush1.msra.mxu0 0.0
    %220 = vmatprep.subr.mxu0 0.0
    %221 = vmatpush1.msra.mxu0 0.0
    %222 = vmatprep.subr.mxu0 0.0
    %223 = vmatpush1.msra.mxu0 0.0
    %224 = vmatprep.subr.mxu0 0.0
    %225 = vmatpush1.msra.mxu0 0.0
    %226 = vmatprep.subr.mxu0 0.0
    %227 = vmatpush1.msra.mxu0 0.0
    %228 = vmatprep.subr.mxu0 0.0
    %229 = vmatpush1.msra.mxu0 0.0
    %230 = vmatprep.subr.mxu0 0.0
    %231 = vmatpush1.msra.mxu0 0.0
    %232 = vmatprep.subr.mxu0 0.0
    %233 = vmatpush1.msra.mxu0 0.0
    %234 = vmatprep.subr.mxu0 0.0
    %235 = vmatpush1.msra.mxu0 0.0
    %236 = vmatprep.subr.mxu0 0.0
    %237 = vmatpush1.msra.mxu0 0.0
    %238 = vmatprep.subr.mxu0 0.0
    %239 = vmatpush1.msra.mxu0 0.0
    %240 = vmatprep.subr.mxu0 0.0
    %241 = vmatpush1.msra.mxu0 0.0
    %242 = vmatprep.subr.mxu0 0.0
    %243 = vmatpush1.msra.mxu0 0.0
    %244 = vmatprep.subr.mxu0 0.0
    %245 = vmatpush1.msra.mxu0 0.0
    %246 = vmatprep.subr.mxu0 0.0
    %247 = vmatpush1.msra.mxu0 0.0
    %248 = vmatprep.subr.mxu0 0.0
    %249 = vmatpush1.msra.mxu0 0.0
    %250 = vmatprep.subr.mxu0 0.0
    %251 = vmatpush1.msra.mxu0 0.0
    %252 = vmatprep.subr.mxu0 0.0
    %253 = vmatpush1.msra.mxu0 0.0
    %254 = vmatprep.subr.mxu0 0.0
    %255 = vmatpush1.msra.mxu0 0.0
    %256 = vmatprep.subr.mxu0 0.0
    %257 = vmatpush1.msra.mxu0 0.0
    %258 = vmatprep.subr.mxu0 0.0
    %259 = vmatpush1.msra.mxu0 0.0
    %260 = vmatprep.subr.mxu0 0.0
    %261 = vmatpush1.msra.mxu0 0.0
    %262 = vmatprep.mubr.f32.mxu0 0.0
    %263 = vmatmul.mubr.f32.gmra.mrb[0].mxu0 %v125
    %v264 = vpop.f32.mrb[0].mxu0
    %v265 = vadd.f32 %v99, %v264
    %v266 = vpop.f32.mrb[0].mxu0
    %v267 = vadd.f32 %v103, %v266
    %268 = vdwg.mxu0
    %269 = vmatprep.subr.mxu0 %v63
    %270 = vmatpush1.msra.mxu0 %v62
    %271 = vmatprep.subr.mxu0 %v70
    %272 = vmatpush1.msra.mxu0 %v69
    %273 = vmatprep.subr.mxu0 %v77
    %274 = vmatpush1.msra.mxu0 %v76
    %275 = vmatprep.subr.mxu0 %v84
    %276 = vmatpush1.msra.mxu0 %v83
    %277 = vmatprep.subr.mxu0 0.0
    %278 = vmatpush1.msra.mxu0 0.0
    %279 = vmatprep.subr.mxu0 0.0
    %280 = vmatpush1.msra.mxu0 0.0
    %281 = vmatprep.subr.mxu0 0.0
    %282 = vmatpush1.msra.mxu0 0.0
    %283 = vmatprep.subr.mxu0 0.0
    %284 = vmatpush1.msra.mxu0 0.0
    %285 = vmatprep.subr.mxu0 0.0
    %286 = vmatpush1.msra.mxu0 0.0
    %287 = vmatprep.subr.mxu0 0.0
    %288 = vmatpush1.msra.mxu0 0.0
    %289 = vmatprep.subr.mxu0 0.0
    %290 = vmatpush1.msra.mxu0 0.0
    %291 = vmatprep.subr.mxu0 0.0
    %292 = vmatpush1.msra.mxu0 0.0
    %293 = vmatprep.subr.mxu0 0.0
    %294 = vmatpush1.msra.mxu0 0.0
    %295 = vmatprep.subr.mxu0 0.0
    %296 = vmatpush1.msra.mxu0 0.0
    %297 = vmatprep.subr.mxu0 0.0
    %298 = vmatpush1.msra.mxu0 0.0
    %299 = vmatprep.subr.mxu0 0.0
    %300 = vmatpush1.msra.mxu0 0.0
    %301 = vmatprep.subr.mxu0 0.0
    %302 = vmatpush1.msra.mxu0 0.0
    %303 = vmatprep.subr.mxu0 0.0
    %304 = vmatpush1.msra.mxu0 0.0
    %305 = vmatprep.subr.mxu0 0.0
    %306 = vmatpush1.msra.mxu0 0.0
    %307 = vmatprep.subr.mxu0 0.0
    %308 = vmatpush1.msra.mxu0 0.0
    %309 = vmatprep.subr.mxu0 0.0
    %310 = vmatpush1.msra.mxu0 0.0
    %311 = vmatprep.subr.mxu0 0.0
    %312 = vmatpush1.msra.mxu0 0.0
    %313 = vmatprep.subr.mxu0 0.0
    %314 = vmatpush1.msra.mxu0 0.0
    %315 = vmatprep.subr.mxu0 0.0
    %316 = vmatpush1.msra.mxu0 0.0
    %317 = vmatprep.subr.mxu0 0.0
    %318 = vmatpush1.msra.mxu0 0.0
    %319 = vmatprep.subr.mxu0 0.0
    %320 = vmatpush1.msra.mxu0 0.0
    %321 = vmatprep.subr.mxu0 0.0
    %322 = vmatpush1.msra.mxu0 0.0
    %323 = vmatprep.subr.mxu0 0.0
    %324 = vmatpush1.msra.mxu0 0.0
    %325 = vmatprep.subr.mxu0 0.0
    %326 = vmatpush1.msra.mxu0 0.0
    %327 = vmatprep.subr.mxu0 0.0
    %328 = vmatpush1.msra.mxu0 0.0
    %329 = vmatprep.subr.mxu0 0.0
    %330 = vmatpush1.msra.mxu0 0.0
    %331 = vmatprep.subr.mxu0 0.0
    %332 = vmatpush1.msra.mxu0 0.0
    %333 = vmatprep.mubr.f32.mxu0 0.0
    %334 = vmatmul.mubr.f32.gmra.mrb[0].mxu0 %v125
    %v335 = vpop.f32.mrb[0].mxu0
    %v336 = vadd.f32 %v107, %v335
    %v337 = vpop.f32.mrb[0].mxu0
    %v338 = vadd.f32 %v111, %v337
    %339 = vdwg.mxu0
    %340 = vmatprep.subr.mxu0 0.0
    %341 = vmatpush1.msra.mxu0 %v64
    %342 = vmatprep.subr.mxu0 0.0
    %343 = vmatpush1.msra.mxu0 %v71
    %344 = vmatprep.subr.mxu0 0.0
    %345 = vmatpush1.msra.mxu0 %v78
    %346 = vmatprep.subr.mxu0 0.0
    %347 = vmatpush1.msra.mxu0 %v85
    %348 = vmatprep.subr.mxu0 0.0
    %349 = vmatpush1.msra.mxu0 0.0
    %350 = vmatprep.subr.mxu0 0.0
    %351 = vmatpush1.msra.mxu0 0.0
    %352 = vmatprep.subr.mxu0 0.0
    %353 = vmatpush1.msra.mxu0 0.0
    %354 = vmatprep.subr.mxu0 0.0
    %355 = vmatpush1.msra.mxu0 0.0
    %356 = vmatprep.subr.mxu0 0.0
    %357 = vmatpush1.msra.mxu0 0.0
    %358 = vmatprep.subr.mxu0 0.0
    %359 = vmatpush1.msra.mxu0 0.0
    %360 = vmatprep.subr.mxu0 0.0
    %361 = vmatpush1.msra.mxu0 0.0
    %362 = vmatprep.subr.mxu0 0.0
    %363 = vmatpush1.msra.mxu0 0.0
    %364 = vmatprep.subr.mxu0 0.0
    %365 = vmatpush1.msra.mxu0 0.0
    %366 = vmatprep.subr.mxu0 0.0
    %367 = vmatpush1.msra.mxu0 0.0
    %368 = vmatprep.subr.mxu0 0.0
    %369 = vmatpush1.msra.mxu0 0.0
    %370 = vmatprep.subr.mxu0 0.0
    %371 = vmatpush1.msra.mxu0 0.0
    %372 = vmatprep.subr.mxu0 0.0
    %373 = vmatpush1.msra.mxu0 0.0
    %374 = vmatprep.subr.mxu0 0.0
    %375 = vmatpush1.msra.mxu0 0.0
    %376 = vmatprep.subr.mxu0 0.0
    %377 = vmatpush1.msra.mxu0 0.0
    %378 = vmatprep.subr.mxu0 0.0
    %379 = vmatpush1.msra.mxu0 0.0
    %380 = vmatprep.subr.mxu0 0.0
    %381 = vmatpush1.msra.mxu0 0.0
    %382 = vmatprep.subr.mxu0 0.0
    %383 = vmatpush1.msra.mxu0 0.0
    %384 = vmatprep.subr.mxu0 0.0
    %385 = vmatpush1.msra.mxu0 0.0
    %386 = vmatprep.subr.mxu0 0.0
    %387 = vmatpush1.msra.mxu0 0.0
    %388 = vmatprep.subr.mxu0 0.0
    %389 = vmatpush1.msra.mxu0 0.0
    %390 = vmatprep.subr.mxu0 0.0
    %391 = vmatpush1.msra.mxu0 0.0
    %392 = vmatprep.subr.mxu0 0.0
    %393 = vmatpush1.msra.mxu0 0.0
    %394 = vmatprep.subr.mxu0 0.0
    %395 = vmatpush1.msra.mxu0 0.0
    %396 = vmatprep.subr.mxu0 0.0
    %397 = vmatpush1.msra.mxu0 0.0
    %398 = vmatprep.subr.mxu0 0.0
    %399 = vmatpush1.msra.mxu0 0.0
    %400 = vmatprep.subr.mxu0 0.0
    %401 = vmatpush1.msra.mxu0 0.0
    %402 = vmatprep.subr.mxu0 0.0
    %403 = vmatpush1.msra.mxu0 0.0
    %404 = vmatprep.mubr.f32.mxu0 0.0
    %405 = vmatmul.mubr.f32.gmra.mrb[0].mxu0 %v125
    %v406 = vpop.f32.mrb[0].mxu0
    %v407 = vadd.f32 %v115, %v406
    %v408 = vpop.f32.mrb[0].mxu0
    %409 = vdwg.mxu0
    %410 = vst [vmem:[#allocation8] sm:$0xff] %v194
    %411 = vst [vmem:[#allocation8 + $0x8] sm:$0xff] %v196
    %412 = vst [vmem:[#allocation8 + $0x10] sm:$0xff] %v265
    %413 = vst [vmem:[#allocation8 + $0x18] sm:$0xff] %v267
    %414 = vst [vmem:[#allocation8 + $0x20] sm:$0xff] %v336
    %415 = vst [vmem:[#allocation8 + $0x28] sm:$0xff] %v338
    %416 = vst [vmem:[#allocation8 + $0x30] sm:$0xff] %v407
    // Predicated region
    $region30: #{tpu_custom_call.1} parent=1 // pred_check
      _
    $region31: #{tpu_custom_call.1} parent=1 // pred_check_branch
      %418 = sbr.rel (0) target = $region33
    $region32: #{tpu_custom_call.1} parent=1 // pred_region
      %s420 = ssub.s32 896, 896
      %421 = vsyncadd [#allocation4], %s420
      %s423 = sshll.u32 [#allocation8], 4
      %s424 = int_to_ptr.vmem [resolvable:$true] %s423
      %426 = dma.vmem_to_hbm [thread:$0]  %s424, 896, %s4, [#allocation4]
    $region33: #{tpu_custom_call.1} parent=1 // pred_fallthru
      _
    // Predicated region
    $region34: #{tpu_custom_call.1} parent=1 // pred_check
      _
    $region35: #{tpu_custom_call.1} parent=1 // pred_check_branch
      %428 = sbr.rel (0) target = $region37
    $region36: #{tpu_custom_call.1} parent=1 // pred_region
      %429 = dma.done [#allocation4], 896
    $region37: #{tpu_custom_call.1} parent=1 // pred_fallthru
      _
    %430 = vsyncpa [#allocation3], 1
    %431 = vsyncpa [#allocation6], 1
    %432 = vsyncpa [#allocation4], 1

</llo_original>
